<compile_context>
chip_gen: v7x
topology: tpu7x:2x2x1
jax: 0.10.0
libtpu: 0.0.40
codegen_flags: <defaults>
</compile_context>

<pallas_src>
import math
from functools import partial
from typing import NamedTuple

import jax
import jax.numpy as jnp
from jax import lax
from jax.experimental import pallas as pl
from jax.experimental.pallas import tpu as pltpu


def _round_up(x: int, m: int) -> int:
    return (x + m - 1) // m * m


def _cdiv(a: int, b: int) -> int:
    return -(-a // b)


# ----------------------------------------------------------------------------
# Sinusoidal (non-trainable) table — identical to FixedEmbedding.__init__
# ----------------------------------------------------------------------------
def _build_fixed_embedding_table(c_in: int, d_model: int) -> jnp.ndarray:
    assert d_model % 2 == 0, "d_model must be even (matches PyTorch slicing)"
    position = jnp.arange(c_in, dtype=jnp.float32)[:, None]              # (c_in, 1)
    div_term = jnp.exp(
        jnp.arange(0, d_model, 2, dtype=jnp.float32)
        * -(math.log(10000.0) / d_model)
    )                                                                     # (d_model/2,)
    ang = position * div_term                                             # (c_in, d_model/2)
    w = jnp.zeros((c_in, d_model), dtype=jnp.float32)
    w = w.at[:, 0::2].set(jnp.sin(ang))
    w = w.at[:, 1::2].set(jnp.cos(ang))
    return w


class TemporalEmbeddingParams(NamedTuple):
    w_combined: jnp.ndarray   # (vocab_pad, d_model) float32, vocab_pad multiple of 128
    offsets: jnp.ndarray      # (1, C) int32 — row offset of each feature's sub-table
    max_ids: jnp.ndarray      # (1, C) int32 — vocab_c - 1, for clamping
    num_cols: int
    d_model: int


def make_temporal_embedding_params(d_model: int, freq: str = "h") -> TemporalEmbeddingParams:
    """Build the combined, 128-row-padded table + offsets ONCE (hoisted out of forward).

    Column order of x[..., c]: month, day, weekday, hour[, minute].
    """
    minute_size, hour_size, weekday_size, day_size, month_size = 4, 24, 7, 32, 13
    vocabs = [month_size, day_size, weekday_size, hour_size]
    if freq == "t":
        vocabs.append(minute_size)
    num_cols = len(vocabs)

    offsets, off = [], 0
    for v in vocabs:
        offsets.append(off)
        off += v
    vocab_pad = _round_up(max(off, 1), 128)

    w_combined = jnp.zeros((vocab_pad, d_model), jnp.float32)
    for c, v in enumerate(vocabs):
        w_combined = w_combined.at[offsets[c]:offsets[c] + v, :].set(
            _build_fixed_embedding_table(v, d_model)
        )

    return TemporalEmbeddingParams(
        w_combined=w_combined,
        offsets=jnp.asarray([offsets], dtype=jnp.int32),
        max_ids=jnp.asarray([[v - 1 for v in vocabs]], dtype=jnp.int32),
        num_cols=num_cols,
        d_model=d_model,
    )


# ----------------------------------------------------------------------------
# Kernel: fused multi-table gather + sum via one multi-hot MXU matmul per tile
# ----------------------------------------------------------------------------
def _temporal_kernel(ids_ref, w_ref, o_ref, *, num_cols: int):
    ids = ids_ref[...]                                        # (tile_n, C) int32, offsets folded in
    tile_n = ids.shape[0]
    vocab_pad = w_ref.shape[0]
    iota = lax.broadcasted_iota(jnp.int32, (tile_n, vocab_pad), 1)
    # Offset ranges are disjoint, so the per-feature one-hot hits never overlap:
    # combine boolean compares with OR and convert to the compute dtype ONCE.
    hit = iota == ids[:, 0:1]
    for c in range(1, num_cols):
        hit = jnp.logical_or(hit, iota == ids[:, c:c + 1])
    multi_hot = hit.astype(w_ref.dtype)
    acc = jnp.dot(multi_hot, w_ref[...], preferred_element_type=jnp.float32)
    o_ref[...] = acc.astype(o_ref.dtype)


# ----------------------------------------------------------------------------
# Wrapper: TemporalEmbedding.forward
# ----------------------------------------------------------------------------
def temporal_embedding(
    x: jnp.ndarray,
    params: TemporalEmbeddingParams,
    *,
    max_tile_n: int = 1024,
    min_pallas_rows: int = 1024,
    out_dtype=jnp.float32,
    compute_dtype=jnp.float32,
    vmem_budget_bytes: int = 24 << 20,   # conservative: fits v7x's 64 MiB / 32 MiB scoped
) -> jnp.ndarray:
    """x: (..., C) integer time-feature indices; returns sum_c tables[c][x[..., c]]."""
    num_cols = params.num_cols
    d_model = params.d_model
    lead_shape = x.shape[:-1]

    ids = x[..., :num_cols].reshape(-1, num_cols).astype(jnp.int32)      # (N, C)
    n = ids.shape[0]

    # Single vectorized clamp (required: an OOB id would land in a neighboring
    # table's offset range) + fold the per-feature table offsets in, so the
    # kernel compares iota directly against the adjusted ids.
    ids = jnp.clip(ids, 0, params.max_ids) + params.offsets

    if n < min_pallas_rows:
        # Small-N fallback: pallas_call launch overhead dominates; plain XLA gather.
        out = jnp.take(params.w_combined, ids, axis=0).sum(axis=1)
        return out.astype(out_dtype).reshape(*lead_shape, d_model)

    w = params.w_combined
    if compute_dtype != w.dtype:
        w = w.astype(compute_dtype)       # opt-in bf16 MXU path (exact 0/1 multi-hot)
    vocab_pad = w.shape[0]

    # ---- Row tiling: large tiles (amortize ~0.35 us/step), >=2 steps for v7x's
    # ---- second TensorCore, VMEM-guarded for v7x's smaller VMEM.
    num_tiles = _cdiv(n, max_tile_n)
    if num_tiles == 1 and n >= 256:
        num_tiles = 2
    tile_n = _round_up(_cdiv(n, num_tiles), 8)

    def _vmem_bytes(t):
        return (2 * t * num_cols * 4            # ids (double-buffered)
                + 2 * t * d_model * jnp.dtype(out_dtype).itemsize   # output (double-buffered)
                + 2 * vocab_pad * d_model * jnp.dtype(w.dtype).itemsize  # table
                + t * vocab_pad * 4)            # in-kernel iota / multi-hot slab

    while tile_n > 256 and _vmem_bytes(tile_n) > vmem_budget_bytes:
        tile_n = _round_up(_cdiv(tile_n, 2), 8)

    num_tiles = _cdiv(n, tile_n)
    n_pad = tile_n * num_tiles
    if n_pad != n:
        ids = jnp.pad(ids, ((0, n_pad - n), (0, 0)))

    kernel = partial(_temporal_kernel, num_cols=num_cols)

    out = pl.pallas_call(
        kernel,
        out_shape=jax.ShapeDtypeStruct((n_pad, d_model), out_dtype),
        grid=(num_tiles,),
        in_specs=[
            # Per-tile index block (regular blocked VMEM input).
            pl.BlockSpec((tile_n, num_cols), lambda i: (i, 0)),
            # Combined table: same block every step -> fetched once, stays in VMEM.
            pl.BlockSpec((vocab_pad, d_model), lambda i: (0, 0)),
        ],
        out_specs=pl.BlockSpec((tile_n, d_model), lambda i: (i, 0)),
        compiler_params=pltpu.CompilerParams(
            dimension_semantics=("parallel",),
        ),
    )(ids, w)

    return out[:n].reshape(*lead_shape, d_model)


# ----------------------------------------------------------------------------
# Test harness
# ----------------------------------------------------------------------------
def _reference(x: jnp.ndarray, d_model: int, freq: str) -> jnp.ndarray:
    """Plain-JAX replica of TemporalEmbedding.forward (PyTorch summation order)."""
    month = _build_fixed_embedding_table(13, d_model)
    day = _build_fixed_embedding_table(32, d_model)
    weekday = _build_fixed_embedding_table(7, d_model)
    hour = _build_fixed_embedding_table(24, d_model)
    out = (jnp.take(hour, x[..., 3], axis=0)
           + jnp.take(weekday, x[..., 2], axis=0)
           + jnp.take(day, x[..., 1], axis=0)
           + jnp.take(month, x[..., 0], axis=0))
    if freq == "t":
        minute = _build_fixed_embedding_table(4, d_model)
        out = out + jnp.take(minute, x[..., 4], axis=0)
    return out


def _random_time_features(key, shape, freq):
    vocabs = [13, 32, 7, 24] + ([4] if freq == "t" else [])
    keys = jax.random.split(key, len(vocabs))
    cols = [jax.random.randint(keys[c], shape + (1,), 0, vocabs[c], dtype=jnp.int32)
            for c in range(len(vocabs))]
    return jnp.concatenate(cols, axis=-1)


if __name__ == "__main__":
    key = jax.random.PRNGKey(0)
    k1, k2 = jax.random.split(key)

    # ---- Case 1: small shapes as the module implies (B=2, L=8, d_model=32, freq='h').
    #      Force the Pallas path (min_pallas_rows=0) so the kernel actually runs.
    d_model, freq = 32, "h"
    params = make_temporal_embedding_params(d_model, freq)
    x = _random_time_features(k1, (2, 8), freq)                # (2, 8, 4)
    out = temporal_embedding(x, params, min_pallas_rows=0)
    out = jax.block_until_ready(out)
    ref = _reference(x, d_model, freq)
    assert out.shape == (2, 8, d_model) and out.dtype == jnp.float32
    assert jnp.allclose(out, ref, atol=1e-5, rtol=1e-5)

    # ---- Case 2: freq='t' (minute embedding) with a multi-step grid + row padding.
    d_model2, freq2 = 64, "t"
    params2 = make_temporal_embedding_params(d_model2, freq2)
    x2 = _random_time_features(k2, (4, 600), freq2)            # (4, 600, 5) -> 2400 rows
    out2 = temporal_embedding(x2, params2)
    out2 = jax.block_until_ready(out2)
    ref2 = _reference(x2, d_model2, freq2)
    assert out2.shape == (4, 600, d_model2) and out2.dtype == jnp.float32
    assert jnp.allclose(out2, ref2, atol=1e-5, rtol=1e-5)

    print("KERNEL_OK")
</pallas_src>

<mosaic_0001>
module attributes {stable_mosaic.version = 11 : i64} {
  func.func @_temporal_kernel(%arg0: i32, %arg1: memref<16x4xi32, #tpu.memory_space<vmem>>, %arg2: memref<128x32xf32, #tpu.memory_space<vmem>>, %arg3: memref<16x32xf32, #tpu.memory_space<vmem>>) attributes {dimension_semantics = [#tpu.dimension_semantics<parallel>], iteration_bounds = array<i64: 1>, scalar_prefetch = 0 : i64, scratch_operands = 0 : i64, tpu.core_type = #tpu.core_type<tc>, window_params = [{transform_indices = @transform_0, window_bounds = array<i64: 16, 4>}, {pipeline_mode = #tpu.pipeline_mode<synchronous>, transform_indices = @transform_1, window_bounds = array<i64: 128, 32>}, {transform_indices = @transform_2, window_bounds = array<i64: 16, 32>}]} {
    %c0 = arith.constant 0 : index
    %c0_0 = arith.constant 0 : index
    %0 = vector.load %arg1[%c0, %c0_0] : memref<16x4xi32, #tpu.memory_space<vmem>>, vector<16x4xi32>
    %1 = tpu.iota {dimensions = array<i32: 1>} : vector<16x128xi32>
    %2 = vector.extract_strided_slice %0 {offsets = [0, 0], sizes = [16, 1], strides = [1, 1]} : vector<16x4xi32> to vector<16x1xi32>
    %3 = vector.broadcast %2 : vector<16x1xi32> to vector<16x128xi32>
    %4 = arith.cmpi eq, %1, %3 : vector<16x128xi32>
    %5 = vector.extract_strided_slice %0 {offsets = [0, 1], sizes = [16, 1], strides = [1, 1]} : vector<16x4xi32> to vector<16x1xi32>
    %6 = vector.broadcast %5 : vector<16x1xi32> to vector<16x128xi32>
    %7 = arith.cmpi eq, %1, %6 : vector<16x128xi32>
    %8 = arith.ori %4, %7 : vector<16x128xi1>
    %9 = vector.extract_strided_slice %0 {offsets = [0, 2], sizes = [16, 1], strides = [1, 1]} : vector<16x4xi32> to vector<16x1xi32>
    %10 = vector.broadcast %9 : vector<16x1xi32> to vector<16x128xi32>
    %11 = arith.cmpi eq, %1, %10 : vector<16x128xi32>
    %12 = arith.ori %8, %11 : vector<16x128xi1>
    %13 = vector.extract_strided_slice %0 {offsets = [0, 3], sizes = [16, 1], strides = [1, 1]} : vector<16x4xi32> to vector<16x1xi32>
    %14 = vector.broadcast %13 : vector<16x1xi32> to vector<16x128xi32>
    %15 = arith.cmpi eq, %1, %14 : vector<16x128xi32>
    %16 = arith.ori %12, %15 : vector<16x128xi1>
    %17 = arith.extui %16 : vector<16x128xi1> to vector<16x128xi32>
    %18 = arith.sitofp %17 : vector<16x128xi32> to vector<16x128xf32>
    %c0_1 = arith.constant 0 : index
    %c0_2 = arith.constant 0 : index
    %19 = vector.load %arg2[%c0_1, %c0_2] : memref<128x32xf32, #tpu.memory_space<vmem>>, vector<128x32xf32>
    %cst = arith.constant dense<0.000000e+00> : vector<16x32xf32>
    %20 = tpu.matmul %18, %19, %cst {dimension_numbers = #tpu.dot_dimension_numbers<[1], [0], [0], [1], [0, 0, 1, 1], [], []>} : vector<16x128xf32>, vector<128x32xf32>, vector<16x32xf32> -> vector<16x32xf32>
    %c0_3 = arith.constant 0 : index
    %c0_4 = arith.constant 0 : index
    %21 = vector.load %arg3[%c0_3, %c0_4] : memref<16x32xf32, #tpu.memory_space<vmem>>, vector<16x32xf32>
    tpu.vector_store %arg3[%c0_3, %c0_4], %20 {strides = array<i32>} : memref<16x32xf32, #tpu.memory_space<vmem>>, vector<16x32xf32>,
    return
  }
  func.func @transform_0(%arg0: i32) -> (i32, i32) {
    %c0_i32 = arith.constant 0 : i32
    %c0_i32_0 = arith.constant 0 : i32
    return %arg0, %c0_i32 : i32, i32
  }
  func.func @transform_1(%arg0: i32) -> (i32, i32) {
    %c0_i32 = arith.constant 0 : i32
    %c0_i32_0 = arith.constant 0 : i32
    %c0_i32_1 = arith.constant 0 : i32
    return %c0_i32, %c0_i32_0 : i32, i32
  }
  func.func @transform_2(%arg0: i32) -> (i32, i32) {
    %c0_i32 = arith.constant 0 : i32
    %c0_i32_0 = arith.constant 0 : i32
    return %arg0, %c0_i32 : i32, i32
  }
}

</mosaic_0001>

<llo_original>
// kernel: tpu_custom_call.1
$region0: #{tpu_custom_call.1}
  #allocation0 [shape = 'u32[]', space=smem, size = 0x4, offset = 0x4, fixed_abs, tag = 'smem constant byte address 0x4 - core index']
  #allocation1 [shape = 'u32[144,128]{1,0:T(1,128)}', space=vmem, size = 0x12000, scoped, tag = 'internal scratch']
  %s0 = inlined_call_operand.vmem [shape: s32[16,4], index: 0, kind: input, shape index: {}]
  %s1 = inlined_call_operand.vmem [shape: f32[128,32], index: 1, kind: input, shape index: {}]
  %s2 = inlined_call_operand.hbm [shape: f32[16,32], index: 2, kind: output, shape index: {}]
  %s3 = sld [smem:[#allocation0]]
  $region18: #{tpu_custom_call.1} parent=0
    _
  %s5 = ssub.s32 1, %s3
  %s6 = scalar_select 0, %s5, %s3
  $region1: #{tpu_custom_call.1} parent=0
    #allocation2 [shape = 'u8[8192]{0}', space=vmem, size = 0x2000, scoped, tag = 'output window, operand 0, single buffered']
    #allocation3 [shape = 's32[1]{0}', space=sflag, size = 0x4, scoped, tag = 'scoped memory for tpu_custom_call.1']
    %7 = vsyncpa [#allocation3], 0
    // Predicated region
    $region2: #{tpu_custom_call.1} parent=1 // pred_check
      _
    $region3: #{tpu_custom_call.1} parent=1 // pred_check_branch
      %9 = sbr.rel (0) target = $region5
    $region4: #{tpu_custom_call.1} parent=1 // pred_region
      _
    $region5: #{tpu_custom_call.1} parent=1 // pred_fallthru
      _
    // Predicated region
    $region6: #{tpu_custom_call.1} parent=1 // pred_check
      _
    $region7: #{tpu_custom_call.1} parent=1 // pred_check_branch
      %11 = sbr.rel (0) target = $region9
    $region8: #{tpu_custom_call.1} parent=1 // pred_region
      _
    $region9: #{tpu_custom_call.1} parent=1 // pred_fallthru
      _
    %v12 = vld [vmem:[%s0] sm:$0xff]
    %v13 = vld [vmem:[%s0 + $0x8] sm:$0xff]
    %v14 = vlaneseq
    %v15 = vand.u32 %v14, 127
    %16 = vset.pattern.permute.xlu0 0
    %17 = vperm.xlu0 %16, %v12
    %v18 = vpop.permute.xlu0 %17
    %19 = vset.pattern.permute.xlu0 0
    %20 = vperm.xlu0 %19, %v13
    %v21 = vpop.permute.xlu0 %20
    %vm22 = vcmp.eq.s32.totalorder %v15, %v18
    %vm23 = vcmp.eq.s32.totalorder %v15, %v21
    %24 = vset.pattern.permute.xlu0 1
    %25 = vperm.xlu0 %24, %v12
    %v26 = vpop.permute.xlu0 %25
    %27 = vset.pattern.permute.xlu0 1
    %28 = vperm.xlu0 %27, %v13
    %v29 = vpop.permute.xlu0 %28
    %vm30 = vcmp.eq.s32.totalorder %v15, %v26
    %vm31 = vcmp.eq.s32.totalorder %v15, %v29
    %vm32 = vmor %vm22, %vm30
    %vm33 = vmor %vm23, %vm31
    %34 = vset.pattern.permute.xlu0 2
    %35 = vperm.xlu0 %34, %v12
    %v36 = vpop.permute.xlu0 %35
    %37 = vset.pattern.permute.xlu0 2
    %38 = vperm.xlu0 %37, %v13
    %v39 = vpop.permute.xlu0 %38
    %vm40 = vcmp.eq.s32.totalorder %v15, %v36
    %vm41 = vcmp.eq.s32.totalorder %v15, %v39
    %vm42 = vmor %vm32, %vm40
    %vm43 = vmor %vm33, %vm41
    %44 = vset.pattern.permute.xlu0 3
    %45 = vperm.xlu0 %44, %v12
    %v46 = vpop.permute.xlu0 %45
    %47 = vset.pattern.permute.xlu0 3
    %48 = vperm.xlu0 %47, %v13
    %v49 = vpop.permute.xlu0 %48
    %vm50 = vcmp.eq.s32.totalorder %v15, %v46
    %vm51 = vcmp.eq.s32.totalorder %v15, %v49
    %vm52 = vmor %vm42, %vm50
    %vm53 = vmor %vm43, %vm51
    %v54 = vsel %vm52, 1, 0
    %v55 = vsel %vm53, 1, 0
    %v56 = vcvt.s32.f32 %v54
    %v57 = vcvt.s32.f32 %v55
    %v58 = vld [vmem:[%s1] sm:$0xff]
    %v59 = vld [vmem:[%s1 + $0x8] sm:$0xff]
    %v60 = vld [vmem:[%s1 + $0x10] sm:$0xff]
    %v61 = vld [vmem:[%s1 + $0x18] sm:$0xff]
    %v62 = vld [vmem:[%s1 + $0x20] sm:$0xff]
    %v63 = vld [vmem:[%s1 + $0x28] sm:$0xff]
    %v64 = vld [vmem:[%s1 + $0x30] sm:$0xff]
    %v65 = vld [vmem:[%s1 + $0x38] sm:$0xff]
    %v66 = vld [vmem:[%s1 + $0x40] sm:$0xff]
    %v67 = vld [vmem:[%s1 + $0x48] sm:$0xff]
    %v68 = vld [vmem:[%s1 + $0x50] sm:$0xff]
    %v69 = vld [vmem:[%s1 + $0x58] sm:$0xff]
    %v70 = vld [vmem:[%s1 + $0x60] sm:$0xff]
    %v71 = vld [vmem:[%s1 + $0x68] sm:$0xff]
    %v72 = vld [vmem:[%s1 + $0x70] sm:$0xff]
    %v73 = vld [vmem:[%s1 + $0x78] sm:$0xff]
    %74 = vmatprep.subr.mxu0 0.0
    %75 = vmatpush1.msra.mxu0 %v58
    %76 = vmatprep.subr.mxu0 0.0
    %77 = vmatpush1.msra.mxu0 %v59
    %78 = vmatprep.subr.mxu0 0.0
    %79 = vmatpush1.msra.mxu0 %v60
    %80 = vmatprep.subr.mxu0 0.0
    %81 = vmatpush1.msra.mxu0 %v61
    %82 = vmatprep.subr.mxu0 0.0
    %83 = vmatpush1.msra.mxu0 %v62
    %84 = vmatprep.subr.mxu0 0.0
    %85 = vmatpush1.msra.mxu0 %v63
    %86 = vmatprep.subr.mxu0 0.0
    %87 = vmatpush1.msra.mxu0 %v64
    %88 = vmatprep.subr.mxu0 0.0
    %89 = vmatpush1.msra.mxu0 %v65
    %90 = vmatprep.subr.mxu0 0.0
    %91 = vmatpush1.msra.mxu0 %v66
    %92 = vmatprep.subr.mxu0 0.0
    %93 = vmatpush1.msra.mxu0 %v67
    %94 = vmatprep.subr.mxu0 0.0
    %95 = vmatpush1.msra.mxu0 %v68
    %96 = vmatprep.subr.mxu0 0.0
    %97 = vmatpush1.msra.mxu0 %v69
    %98 = vmatprep.subr.mxu0 0.0
    %99 = vmatpush1.msra.mxu0 %v70
    %100 = vmatprep.subr.mxu0 0.0
    %101 = vmatpush1.msra.mxu0 %v71
    %102 = vmatprep.subr.mxu0 0.0
    %103 = vmatpush1.msra.mxu0 %v72
    %104 = vmatprep.subr.mxu0 0.0
    %105 = vmatpush1.msra.mxu0 %v73
    %106 = vmatprep.subr.mxu0 0.0
    %107 = vmatpush1.msra.mxu0 0.0
    %108 = vmatprep.subr.mxu0 0.0
    %109 = vmatpush1.msra.mxu0 0.0
    %110 = vmatprep.subr.mxu0 0.0
    %111 = vmatpush1.msra.mxu0 0.0
    %112 = vmatprep.subr.mxu0 0.0
    %113 = vmatpush1.msra.mxu0 0.0
    %114 = vmatprep.subr.mxu0 0.0
    %115 = vmatpush1.msra.mxu0 0.0
    %116 = vmatprep.subr.mxu0 0.0
    %117 = vmatpush1.msra.mxu0 0.0
    %118 = vmatprep.subr.mxu0 0.0
    %119 = vmatpush1.msra.mxu0 0.0
    %120 = vmatprep.subr.mxu0 0.0
    %121 = vmatpush1.msra.mxu0 0.0
    %122 = vmatprep.subr.mxu0 0.0
    %123 = vmatpush1.msra.mxu0 0.0
    %124 = vmatprep.subr.mxu0 0.0
    %125 = vmatpush1.msra.mxu0 0.0
    %126 = vmatprep.subr.mxu0 0.0
    %127 = vmatpush1.msra.mxu0 0.0
    %128 = vmatprep.subr.mxu0 0.0
    %129 = vmatpush1.msra.mxu0 0.0
    %130 = vmatprep.subr.mxu0 0.0
    %131 = vmatpush1.msra.mxu0 0.0
    %132 = vmatprep.subr.mxu0 0.0
    %133 = vmatpush1.msra.mxu0 0.0
    %134 = vmatprep.subr.mxu0 0.0
    %135 = vmatpush1.msra.mxu0 0.0
    %136 = vmatprep.subr.mxu0 0.0
    %137 = vmatpush1.msra.mxu0 0.0
    %138 = vmatprep.mubr.f32.mxu0 0.0
    %139 = vmatmul.mubr.f32.gmra.mrb[0].mxu0 %v56
    %v140 = vpop.f32.mrb[0].mxu0
    %v141 = vadd.f32 0.0, %v140
    %v142 = vpop.f32.mrb[0].mxu0
    %143 = vmatprep.mubr.f32.mxu0 0.0
    %144 = vmatmul.mubr.f32.gmra.mrb[0].mxu0 %v57
    %v145 = vpop.f32.mrb[0].mxu0
    %v146 = vadd.f32 0.0, %v145
    %v147 = vpop.f32.mrb[0].mxu0
    %148 = vdwg.mxu0
    %vm149 = vcmask 261120
    %150 = vst.msk [vmem:[#allocation2] sm:$0xff] %vm149, %v141
    %151 = vst.msk [vmem:[#allocation2 + $0x8] sm:$0xff] %vm149, %v146
    // Predicated region
    $region10: #{tpu_custom_call.1} parent=1 // pred_check
      _
    $region11: #{tpu_custom_call.1} parent=1 // pred_check_branch
      %153 = sbr.rel (0) target = $region13
    $region12: #{tpu_custom_call.1} parent=1 // pred_region
      %s155 = ssub.s32 256, 256
      %156 = vsyncadd [#allocation3], %s155
      %s157 = sshll.u32 [#allocation2], 4
      %s158 = int_to_ptr.vmem [resolvable:$true] %s157
      %163 = dma.vmem_to_hbm [thread:$0]  %s158, 256, %s2, [#allocation3], 128, 128, 8
    $region13: #{tpu_custom_call.1} parent=1 // pred_fallthru
      _
    // Predicated region
    $region14: #{tpu_custom_call.1} parent=1 // pred_check
      _
    $region15: #{tpu_custom_call.1} parent=1 // pred_check_branch
      %165 = sbr.rel (0) target = $region17
    $region16: #{tpu_custom_call.1} parent=1 // pred_region
      %166 = dma.done [#allocation3], 256
    $region17: #{tpu_custom_call.1} parent=1 // pred_fallthru
      _
    %167 = vsyncpa [#allocation3], 1

</llo_original>
